<compile_context>
chip_gen: v7x
topology: tpu7x:2x2x1
jax: 0.10.0
libtpu: 0.0.40
codegen_flags: <defaults>
</compile_context>

<pallas_src>
import math

import jax
import jax.numpy as jnp
from jax.experimental import pallas as pl
from jax.experimental.pallas import tpu as pltpu


def _round_up(x, m):
    return pl.cdiv(x, m) * m


def _vmem_cap_bytes():
    """Per-core VMEM budget: physical size minus ~12.5% headroom for
    compiler-internal scratch / DMA descriptors (v5e/v6e: 128 MiB, v7x: 64 MiB)."""
    try:
        physical = int(pltpu.get_tpu_info().vmem_capacity_bytes)
    except Exception:
        physical = 64 * 1024 * 1024  # unknown part: assume the smallest (v7x-sized)
    return max(physical - physical // 8, 16 * 1024 * 1024)


# ----------------------------------------------------------------------------
# Kernels
# ----------------------------------------------------------------------------
def ffn_kernel_resident(x_ref, w1_ref, b1_ref, w2_ref, b2_ref, o_ref):
    # x_ref: (tm, d_in_p)        w1_ref: (d_in_p, d_hid_p)   b1_ref: (1, d_hid_p) f32
    # w2_ref: (d_hid_p, d_in_p)  b2_ref: (1, d_in_p) f32     o_ref: (tm, d_in_p)
    h = jnp.dot(x_ref[...], w1_ref[...], preferred_element_type=jnp.float32)
    h = jnp.maximum(h + b1_ref[...], 0.0)                  # bias + ReLU in f32
    o = jnp.dot(h.astype(w2_ref.dtype), w2_ref[...],
                preferred_element_type=jnp.float32)
    o = o + b2_ref[...]
    # TODO(synk): dropout omitted (module in eval mode -> identity); training
    # dropout would use pltpu.prng_seed + pltpu.stateful_bernoulli with 1/(1-p).
    o_ref[...] = o.astype(o_ref.dtype)


def ffn_kernel_hid_tiled(x_ref, w1_ref, b1_ref, w2_ref, b2_ref, o_ref, acc_ref):
    # Reduction over d_hid (innermost grid axis): per chunk
    #   acc += relu(x @ W1_chunk + b1_chunk) @ W2_chunk
    # x_ref: (tm, d_in_p)     w1_ref: (d_in_p, tk)   b1_ref: (1, tk) f32
    # w2_ref: (tk, d_in_p)    b2_ref: (1, d_in_p) f32
    # o_ref:  (tm, d_in_p)    acc_ref: (tm, d_in_p) f32 scratch
    k = pl.program_id(1)

    @pl.when(k == 0)
    def _():
        acc_ref[...] = jnp.zeros_like(acc_ref)

    h = jnp.dot(x_ref[...], w1_ref[...], preferred_element_type=jnp.float32)
    h = jnp.maximum(h + b1_ref[...], 0.0)
    acc_ref[...] += jnp.dot(h.astype(w2_ref.dtype), w2_ref[...],
                            preferred_element_type=jnp.float32)

    @pl.when(k == pl.num_programs(1) - 1)
    def _():
        o_ref[...] = (acc_ref[...] + b2_ref[...]).astype(o_ref.dtype)


# ----------------------------------------------------------------------------
# Wrapper
# ----------------------------------------------------------------------------
def positionwise_feed_forward(x, w1, b1, w2, b2, *, tm=None, tk_hid=512,
                              force_hid_tiling=False):
    """x: (B, S, d_in). w1: (d_in, d_hid), w2: (d_hid, d_in). Biases 1-D.

    Feature dims are padded to multiples of 128 (zero padding is exact for this
    MLP); the token dim is NOT padded -- the last grid block is ragged and its
    out-of-bounds rows are masked on the output store.
    """
    B, S, d_in = x.shape
    d_hid = w1.shape[1]
    tokens = B * S

    d_in_p = _round_up(d_in, 128)
    d_hid_p = _round_up(d_hid, 128)
    # TODO(synk): on v6e/v7x (256x256 MXU) a 128-wide d_in/d_hid only quarter-
    # fills the array; padding them to 256 trades extra x HBM traffic for MXU
    # fill and is intentionally not done here.

    itm_x = x.dtype.itemsize
    itm_w = w1.dtype.itemsize
    cap = _vmem_cap_bytes()

    def resident_bytes(tm_):
        return (4 * tm_ * d_in_p * itm_x            # x + out tiles, double-buffered
                + 2 * d_in_p * d_hid_p * itm_w      # w1 + w2, single-buffered
                + (d_hid_p + d_in_p) * 4            # biases (f32, single-buffered)
                + tm_ * d_hid_p * 4                 # f32 hidden activations
                + tm_ * d_in_p * 4)                 # f32 output before cast

    def tiled_bytes(tm_, tk_):
        return (4 * tm_ * d_in_p * itm_x            # x + out tiles, double-buffered
                + 4 * d_in_p * tk_ * itm_w          # w1 + w2 slabs, double-buffered
                + 2 * tk_ * 4 + d_in_p * 4          # b1 slabs + b2
                + tm_ * d_in_p * 4                  # f32 accumulator scratch
                + tm_ * tk_ * 4                     # f32 hidden chunk
                + tm_ * d_in_p * 4)                 # f32 partial product

    def _pick_tm(fits):
        for cand in (512, 256, 128):
            if fits(cand):
                return cand
        return 128

    tm_user = tm
    if tm_user is None:
        tm = _pick_tm(lambda t: resident_bytes(t) <= cap)

    use_hid_tiling = force_hid_tiling or resident_bytes(tm) > cap

    if use_hid_tiling and tm_user is None:
        tk_probe = min(_round_up(tk_hid, 128), d_hid_p)
        tm = _pick_tm(lambda t: tiled_bytes(t, tk_probe) <= cap)

    # Don't oversize tiles for tiny inputs; keep sublane dim a multiple of 8.
    tm = max(8, min(tm, _round_up(tokens, 8)))
    # Keep >= 2 token blocks when there is enough work: shards the "parallel"
    # axis across TensorCores (v7x megacore) and keeps the DMA pipeline >=2 deep.
    if tokens > 256 and pl.cdiv(tokens, tm) < 2:
        tm = max(128, _round_up(pl.cdiv(tokens, 2), 8))

    tk = None
    if use_hid_tiling:
        tk = min(_round_up(tk_hid, 128), d_hid_p)
        # tk must evenly divide d_hid_p (ragged hid blocks would read garbage
        # weight columns that DO contaminate the reduction); 128 always divides.
        while tk > 128 and (d_hid_p % tk != 0 or tiled_bytes(tm, tk) > cap):
            tk -= 128

    grid_m = pl.cdiv(tokens, tm)

    # --- host-side operand prep (feature-dim zero padding only, exact) -------
    x2d = x.reshape(tokens, d_in)
    if d_in_p != d_in:
        x2d = jnp.pad(x2d, ((0, 0), (0, d_in_p - d_in)))
    if d_in_p != d_in or d_hid_p != d_hid:
        w1p = jnp.pad(w1, ((0, d_in_p - d_in), (0, d_hid_p - d_hid)))
        w2p = jnp.pad(w2, ((0, d_hid_p - d_hid), (0, d_in_p - d_in)))
    else:
        w1p, w2p = w1, w2
    # Biases kept in f32 so bias-add / ReLU stay full precision with bf16 weights.
    b1p = jnp.pad(b1.astype(jnp.float32), (0, d_hid_p - d_hid)).reshape(1, d_hid_p)
    b2p = jnp.pad(b2.astype(jnp.float32), (0, d_in_p - d_in)).reshape(1, d_in_p)

    flops = 4 * tokens * d_in_p * d_hid_p  # two matmuls, 2*M*N*K each

    if not use_hid_tiling:
        est = resident_bytes(tm)
        vmem_limit = int(min(cap, max(est + est // 8, 32 * 1024 * 1024)))
        bytes_accessed = (tokens * d_in_p * itm_x * 2        # x in + out
                          + 2 * d_in_p * d_hid_p * itm_w     # w1 + w2 (once)
                          + (d_hid_p + d_in_p) * 4)          # biases

        out2d = pl.pallas_call(
            ffn_kernel_resident,
            out_shape=jax.ShapeDtypeStruct((tokens, d_in_p), x.dtype),
            grid_spec=pltpu.PrefetchScalarGridSpec(
                num_scalar_prefetch=0,
                grid=(grid_m,),
                in_specs=[
                    pl.BlockSpec((tm, d_in_p), lambda i: (i, 0)),       # x tile
                    pl.BlockSpec((d_in_p, d_hid_p), lambda i: (0, 0),
                                 pipeline_mode=pl.Buffered(1)),          # w1 resident
                    pl.BlockSpec((1, d_hid_p), lambda i: (0, 0),
                                 pipeline_mode=pl.Buffered(1)),          # b1
                    pl.BlockSpec((d_hid_p, d_in_p), lambda i: (0, 0),
                                 pipeline_mode=pl.Buffered(1)),          # w2 resident
                    pl.BlockSpec((1, d_in_p), lambda i: (0, 0),
                                 pipeline_mode=pl.Buffered(1)),          # b2
                ],
                out_specs=pl.BlockSpec((tm, d_in_p), lambda i: (i, 0)),
            ),
            compiler_params=pltpu.CompilerParams(
                dimension_semantics=("parallel",),
                vmem_limit_bytes=vmem_limit,
            ),
            cost_estimate=pl.CostEstimate(
                flops=flops, transcendentals=0, bytes_accessed=bytes_accessed),
        )(x2d, w1p, b1p, w2p, b2p)
    else:
        grid_k = d_hid_p // tk
        est = tiled_bytes(tm, tk)
        vmem_limit = int(min(cap, max(est + est // 8, 32 * 1024 * 1024)))
        bytes_accessed = (tokens * d_in_p * itm_x * 2
                          + grid_m * 2 * d_in_p * d_hid_p * itm_w  # weights re-streamed
                          + grid_m * (d_hid_p + d_in_p) * 4)

        out2d = pl.pallas_call(
            ffn_kernel_hid_tiled,
            out_shape=jax.ShapeDtypeStruct((tokens, d_in_p), x.dtype),
            grid_spec=pltpu.PrefetchScalarGridSpec(
                num_scalar_prefetch=0,
                grid=(grid_m, grid_k),
                in_specs=[
                    pl.BlockSpec((tm, d_in_p), lambda i, k: (i, 0)),     # x tile
                    pl.BlockSpec((d_in_p, tk), lambda i, k: (0, k)),     # w1 slab
                    pl.BlockSpec((1, tk), lambda i, k: (0, k)),          # b1 slab
                    pl.BlockSpec((tk, d_in_p), lambda i, k: (k, 0)),     # w2 slab
                    pl.BlockSpec((1, d_in_p), lambda i, k: (0, 0),
                                 pipeline_mode=pl.Buffered(1)),          # b2
                ],
                out_specs=pl.BlockSpec((tm, d_in_p), lambda i, k: (i, 0)),
                scratch_shapes=[pltpu.VMEM((tm, d_in_p), jnp.float32)],
            ),
            compiler_params=pltpu.CompilerParams(
                dimension_semantics=("parallel", "arbitrary"),
                vmem_limit_bytes=vmem_limit,
            ),
            cost_estimate=pl.CostEstimate(
                flops=flops, transcendentals=0, bytes_accessed=bytes_accessed),
        )(x2d, w1p, b1p, w2p, b2p)

    return out2d[:, :d_in].reshape(B, S, d_in)


def init_params(key, d_in, d_hid, dtype=jnp.float32):
    """Mimics layer_init: orthogonal weights with gain sqrt(2), zero bias.

    PyTorch nn.Linear weight is (out, in); transpose to (in, out) for x @ W.
    """
    k1, k2 = jax.random.split(key)
    ortho = jax.nn.initializers.orthogonal(scale=math.sqrt(2.0))
    w1 = jnp.transpose(ortho(k1, (d_hid, d_in), jnp.float32)).astype(dtype)
    w2 = jnp.transpose(ortho(k2, (d_in, d_hid), jnp.float32)).astype(dtype)
    b1 = jnp.zeros((d_hid,), jnp.float32)
    b2 = jnp.zeros((d_in,), jnp.float32)
    return w1, b1, w2, b2


if __name__ == "__main__":
    key = jax.random.PRNGKey(0)
    k_x, k_p, k_x2, k_p2, k_x3, k_p3 = jax.random.split(key, 6)

    # --- Test 1: small f32 demo shapes (module-sized), resident-weight path --
    B, S, d_in, d_hid = 2, 8, 32, 64
    x = jax.random.normal(k_x, (B, S, d_in), dtype=jnp.float32)
    w1, b1, w2, b2 = init_params(k_p, d_in, d_hid, dtype=jnp.float32)

    out = positionwise_feed_forward(x, w1, b1, w2, b2)
    out = jax.block_until_ready(out)

    ref = jnp.maximum(x @ w1 + b1, 0.0) @ w2 + b2
    assert out.shape == (B, S, d_in)
    assert jnp.allclose(out, ref, atol=1e-4, rtol=1e-4), float(
        jnp.max(jnp.abs(out - ref)))

    # --- Test 2: bf16 weights/activations, multi-block grid, lane-dense dims -
    B2, S2, d_in2, d_hid2 = 4, 128, 128, 256
    x2 = jax.random.normal(k_x2, (B2, S2, d_in2), dtype=jnp.float32)
    w1b, b1b, w2b, b2b = init_params(k_p2, d_in2, d_hid2, dtype=jnp.float32)

    out2 = positionwise_feed_forward(
        x2.astype(jnp.bfloat16),
        w1b.astype(jnp.bfloat16), b1b,
        w2b.astype(jnp.bfloat16), b2b)
    out2 = jax.block_until_ready(out2)

    xb = x2.astype(jnp.bfloat16).astype(jnp.float32)
    w1f = w1b.astype(jnp.bfloat16).astype(jnp.float32)
    w2f = w2b.astype(jnp.bfloat16).astype(jnp.float32)
    ref2 = jnp.maximum(xb @ w1f + b1b, 0.0) @ w2f + b2b
    assert out2.shape == (B2, S2, d_in2)
    err2 = float(jnp.max(jnp.abs(out2.astype(jnp.float32) - ref2)))
    assert err2 < 0.25, err2

    # --- Test 3: force the d_hid-tiled reduction path (v7x large-model path) -
    B3, S3, d_in3, d_hid3 = 2, 64, 128, 384
    x3 = jax.random.normal(k_x3, (B3, S3, d_in3), dtype=jnp.float32)
    w13, b13, w23, b23 = init_params(k_p3, d_in3, d_hid3, dtype=jnp.float32)

    out3 = positionwise_feed_forward(x3, w13, b13, w23, b23,
                                     tk_hid=128, force_hid_tiling=True)
    out3 = jax.block_until_ready(out3)

    ref3 = jnp.maximum(x3 @ w13 + b13, 0.0) @ w23 + b23
    assert out3.shape == (B3, S3, d_in3)
    err3 = float(jnp.max(jnp.abs(out3 - ref3)))
    assert err3 < 1e-3, err3

    print("KERNEL_OK")
</pallas_src>

<mosaic_0001>
module attributes {stable_mosaic.version = 11 : i64} {
  func.func @ffn_kernel_resident(%arg0: i32, %arg1: memref<16x128xf32, #tpu.memory_space<vmem>>, %arg2: memref<128x128xf32, #tpu.memory_space<vmem>>, %arg3: memref<1x128xf32, #tpu.memory_space<vmem>>, %arg4: memref<128x128xf32, #tpu.memory_space<vmem>>, %arg5: memref<1x128xf32, #tpu.memory_space<vmem>>, %arg6: memref<16x128xf32, #tpu.memory_space<vmem>>) attributes {dimension_semantics = [#tpu.dimension_semantics<parallel>], iteration_bounds = array<i64: 1>, scalar_prefetch = 0 : i64, scratch_operands = 0 : i64, tpu.core_type = #tpu.core_type<tc>, window_params = [{transform_indices = @transform_0, window_bounds = array<i64: 16, 128>}, {pipeline_mode = #tpu.pipeline_mode<synchronous>, transform_indices = @transform_1, window_bounds = array<i64: 128, 128>}, {pipeline_mode = #tpu.pipeline_mode<synchronous>, transform_indices = @transform_2, window_bounds = array<i64: 1, 128>}, {pipeline_mode = #tpu.pipeline_mode<synchronous>, transform_indices = @transform_3, window_bounds = array<i64: 128, 128>}, {pipeline_mode = #tpu.pipeline_mode<synchronous>, transform_indices = @transform_4, window_bounds = array<i64: 1, 128>}, {transform_indices = @transform_5, window_bounds = array<i64: 16, 128>}]} {
    %c0 = arith.constant 0 : index
    %c0_0 = arith.constant 0 : index
    %0 = vector.load %arg1[%c0, %c0_0] : memref<16x128xf32, #tpu.memory_space<vmem>>, vector<16x128xf32>
    %c0_1 = arith.constant 0 : index
    %c0_2 = arith.constant 0 : index
    %1 = vector.load %arg2[%c0_1, %c0_2] : memref<128x128xf32, #tpu.memory_space<vmem>>, vector<128x128xf32>
    %cst = arith.constant dense<0.000000e+00> : vector<16x128xf32>
    %2 = tpu.matmul %0, %1, %cst {dimension_numbers = #tpu.dot_dimension_numbers<[1], [0], [0], [1], [0, 0, 1, 1], [], []>} : vector<16x128xf32>, vector<128x128xf32>, vector<16x128xf32> -> vector<16x128xf32>
    %c0_3 = arith.constant 0 : index
    %c0_4 = arith.constant 0 : index
    %3 = vector.load %arg3[%c0_3, %c0_4] : memref<1x128xf32, #tpu.memory_space<vmem>>, vector<1x128xf32>
    %4 = vector.broadcast %3 : vector<1x128xf32> to vector<16x128xf32>
    %5 = arith.addf %2, %4 : vector<16x128xf32>
    %cst_5 = arith.constant 0.000000e+00 : f32
    %6 = vector.broadcast %cst_5 : f32 to vector<16x128xf32>
    %7 = arith.maximumf %5, %6 : vector<16x128xf32>
    %c0_6 = arith.constant 0 : index
    %c0_7 = arith.constant 0 : index
    %8 = vector.load %arg4[%c0_6, %c0_7] : memref<128x128xf32, #tpu.memory_space<vmem>>, vector<128x128xf32>
    %cst_8 = arith.constant dense<0.000000e+00> : vector<16x128xf32>
    %9 = tpu.matmul %7, %8, %cst_8 {dimension_numbers = #tpu.dot_dimension_numbers<[1], [0], [0], [1], [0, 0, 1, 1], [], []>} : vector<16x128xf32>, vector<128x128xf32>, vector<16x128xf32> -> vector<16x128xf32>
    %c0_9 = arith.constant 0 : index
    %c0_10 = arith.constant 0 : index
    %10 = vector.load %arg5[%c0_9, %c0_10] : memref<1x128xf32, #tpu.memory_space<vmem>>, vector<1x128xf32>
    %11 = vector.broadcast %10 : vector<1x128xf32> to vector<16x128xf32>
    %12 = arith.addf %9, %11 : vector<16x128xf32>
    %c0_11 = arith.constant 0 : index
    %c0_12 = arith.constant 0 : index
    %13 = vector.load %arg6[%c0_11, %c0_12] : memref<16x128xf32, #tpu.memory_space<vmem>>, vector<16x128xf32>
    tpu.vector_store %arg6[%c0_11, %c0_12], %12 {strides = array<i32>} : memref<16x128xf32, #tpu.memory_space<vmem>>, vector<16x128xf32>,
    return
  }
  func.func @transform_0(%arg0: i32) -> (i32, i32) {
    %c0_i32 = arith.constant 0 : i32
    %c0_i32_0 = arith.constant 0 : i32
    return %arg0, %c0_i32 : i32, i32
  }
  func.func @transform_1(%arg0: i32) -> (i32, i32) {
    %c0_i32 = arith.constant 0 : i32
    %c0_i32_0 = arith.constant 0 : i32
    %c0_i32_1 = arith.constant 0 : i32
    return %c0_i32, %c0_i32_0 : i32, i32
  }
  func.func @transform_2(%arg0: i32) -> (i32, i32) {
    %c0_i32 = arith.constant 0 : i32
    %c0_i32_0 = arith.constant 0 : i32
    %c0_i32_1 = arith.constant 0 : i32
    return %c0_i32, %c0_i32_0 : i32, i32
  }
  func.func @transform_3(%arg0: i32) -> (i32, i32) {
    %c0_i32 = arith.constant 0 : i32
    %c0_i32_0 = arith.constant 0 : i32
    %c0_i32_1 = arith.constant 0 : i32
    return %c0_i32, %c0_i32_0 : i32, i32
  }
  func.func @transform_4(%arg0: i32) -> (i32, i32) {
    %c0_i32 = arith.constant 0 : i32
    %c0_i32_0 = arith.constant 0 : i32
    %c0_i32_1 = arith.constant 0 : i32
    return %c0_i32, %c0_i32_0 : i32, i32
  }
  func.func @transform_5(%arg0: i32) -> (i32, i32) {
    %c0_i32 = arith.constant 0 : i32
    %c0_i32_0 = arith.constant 0 : i32
    return %arg0, %c0_i32 : i32, i32
  }
}

</mosaic_0001>

<llo_original>
// kernel: tpu_custom_call.1
$region0: #{tpu_custom_call.1}
  #allocation0 [shape = 'u32[]', space=smem, size = 0x4, offset = 0x4, fixed_abs, tag = 'smem constant byte address 0x4 - core index']
  #allocation1 [shape = 'u32[144,128]{1,0:T(1,128)}', space=vmem, size = 0x12000, scoped, tag = 'internal scratch']
  %s0 = inlined_call_operand.hbm [shape: f32[16,128], index: 0, kind: input, shape index: {}]
  %s1 = inlined_call_operand.hbm [shape: f32[128,128], index: 1, kind: input, shape index: {}]
  %s2 = inlined_call_operand.vmem [shape: f32[1,128], index: 2, kind: input, shape index: {}]
  %s3 = inlined_call_operand.hbm [shape: f32[128,128], index: 3, kind: input, shape index: {}]
  %s4 = inlined_call_operand.vmem [shape: f32[1,128], index: 4, kind: input, shape index: {}]
  %s5 = inlined_call_operand.hbm [shape: f32[16,128], index: 5, kind: output, shape index: {}]
  %s6 = sld [smem:[#allocation0]]
  $region42: #{tpu_custom_call.1} parent=0
    _
  %s8 = ssub.s32 1, %s6
  %s9 = scalar_select 0, %s8, %s6
  $region1: #{tpu_custom_call.1} parent=0
    #allocation2 [shape = 'u8[8192]{0}', space=vmem, size = 0x2000, scoped, tag = 'input window, operand 0, single buffered']
    #allocation3 [shape = 's32[1]{0}', space=sflag, size = 0x4, scoped, tag = 'scoped memory for tpu_custom_call.1']
    #allocation4 [shape = 's32[1]{0}', space=sflag, size = 0x4, scoped, tag = 'scoped memory for tpu_custom_call.1']
    #allocation5 [shape = 'u8[65536]{0}', space=vmem, size = 0x10000, scoped, tag = 'input window, operand 1, single buffered']
    #allocation6 [shape = 's32[1]{0}', space=sflag, size = 0x4, scoped, tag = 'scoped memory for tpu_custom_call.1']
    #allocation7 [shape = 'u8[65536]{0}', space=vmem, size = 0x10000, scoped, tag = 'input window, operand 3, single buffered']
    #allocation8 [shape = 'u8[8192]{0}', space=vmem, size = 0x2000, scoped, tag = 'output window, operand 0, single buffered']
    %10 = vsyncpa [#allocation3], 0
    %11 = vsyncpa [#allocation6], 0
    %12 = vsyncpa [#allocation4], 0
    // Predicated region
    $region2: #{tpu_custom_call.1} parent=1 // pred_check
      _
    $region3: #{tpu_custom_call.1} parent=1 // pred_check_branch
      %14 = sbr.rel (0) target = $region5
    $region4: #{tpu_custom_call.1} parent=1 // pred_region
      %s16 = ssub.s32 256, 256
      %17 = vsyncadd [#allocation3], %s16
      %s18 = sshll.u32 [#allocation2], 4
      %s19 = int_to_ptr.vmem [resolvable:$true] %s18
      %24 = dma.hbm_to_vmem [thread:$0]  %s0, 256, %s19, [#allocation3], 128, 128, 8
    $region5: #{tpu_custom_call.1} parent=1 // pred_fallthru
      _
    // Predicated region
    $region6: #{tpu_custom_call.1} parent=1 // pred_check
      _
    $region7: #{tpu_custom_call.1} parent=1 // pred_check_branch
      %26 = sbr.rel (0) target = $region9
    $region8: #{tpu_custom_call.1} parent=1 // pred_region
      %s28 = ssub.s32 2048, 2048
      %29 = vsyncadd [#allocation6], %s28
      %s30 = sshll.u32 [#allocation5], 4
      %s31 = int_to_ptr.vmem [resolvable:$true] %s30
      %36 = dma.hbm_to_vmem [thread:$0]  %s1, 2048, %s31, [#allocation6], 128, 128, 8
    $region9: #{tpu_custom_call.1} parent=1 // pred_fallthru
      _
    // Predicated region
    $region10: #{tpu_custom_call.1} parent=1 // pred_check
      _
    $region11: #{tpu_custom_call.1} parent=1 // pred_check_branch
      %38 = sbr.rel (0) target = $region13
    $region12: #{tpu_custom_call.1} parent=1 // pred_region
      _
    $region13: #{tpu_custom_call.1} parent=1 // pred_fallthru
      _
    // Predicated region
    $region14: #{tpu_custom_call.1} parent=1 // pred_check
      _
    $region15: #{tpu_custom_call.1} parent=1 // pred_check_branch
      %40 = sbr.rel (0) target = $region17
    $region16: #{tpu_custom_call.1} parent=1 // pred_region
      %s42 = ssub.s32 2048, 2048
      %43 = vsyncadd [#allocation6], %s42
      %s44 = sshll.u32 [#allocation7], 4
      %s45 = int_to_ptr.vmem [resolvable:$true] %s44
      %50 = dma.hbm_to_vmem [thread:$0]  %s3, 2048, %s45, [#allocation6], 128, 128, 8
    $region17: #{tpu_custom_call.1} parent=1 // pred_fallthru
      _
    // Predicated region
    $region18: #{tpu_custom_call.1} parent=1 // pred_check
      _
    $region19: #{tpu_custom_call.1} parent=1 // pred_check_branch
      %52 = sbr.rel (0) target = $region21
    $region20: #{tpu_custom_call.1} parent=1 // pred_region
      _
    $region21: #{tpu_custom_call.1} parent=1 // pred_fallthru
      _
    // Predicated region
    $region22: #{tpu_custom_call.1} parent=1 // pred_check
      _
    $region23: #{tpu_custom_call.1} parent=1 // pred_check_branch
      %54 = sbr.rel (0) target = $region25
    $region24: #{tpu_custom_call.1} parent=1 // pred_region
      %55 = dma.done [#allocation3], 256
    $region25: #{tpu_custom_call.1} parent=1 // pred_fallthru
      _
    // Predicated region
    $region26: #{tpu_custom_call.1} parent=1 // pred_check
      _
    $region27: #{tpu_custom_call.1} parent=1 // pred_check_branch
      %57 = sbr.rel (0) target = $region29
    $region28: #{tpu_custom_call.1} parent=1 // pred_region
      %58 = dma.done [#allocation6], 2048
    $region29: #{tpu_custom_call.1} parent=1 // pred_fallthru
      _
    // Predicated region
    $region30: #{tpu_custom_call.1} parent=1 // pred_check
      _
    $region31: #{tpu_custom_call.1} parent=1 // pred_check_branch
      %60 = sbr.rel (0) target = $region33
    $region32: #{tpu_custom_call.1} parent=1 // pred_region
      %61 = dma.done [#allocation6], 2048
    $region33: #{tpu_custom_call.1} parent=1 // pred_fallthru
      _
    %v62 = vld [vmem:[#allocation2] sm:$0xff]
    %v63 = vld [vmem:[#allocation2 + $0x8] sm:$0xff]
    %v64 = vld [vmem:[#allocation5] sm:$0xff]
    %v65 = vld [vmem:[#allocation5 + $0x8] sm:$0xff]
    %v66 = vld [vmem:[#allocation5 + $0x10] sm:$0xff]
    %v67 = vld [vmem:[#allocation5 + $0x18] sm:$0xff]
    %v68 = vld [vmem:[#allocation5 + $0x20] sm:$0xff]
    %v69 = vld [vmem:[#allocation5 + $0x28] sm:$0xff]
    %v70 = vld [vmem:[#allocation5 + $0x30] sm:$0xff]
    %v71 = vld [vmem:[#allocation5 + $0x38] sm:$0xff]
    %v72 = vld [vmem:[#allocation5 + $0x40] sm:$0xff]
    %v73 = vld [vmem:[#allocation5 + $0x48] sm:$0xff]
    %v74 = vld [vmem:[#allocation5 + $0x50] sm:$0xff]
    %v75 = vld [vmem:[#allocation5 + $0x58] sm:$0xff]
    %v76 = vld [vmem:[#allocation5 + $0x60] sm:$0xff]
    %v77 = vld [vmem:[#allocation5 + $0x68] sm:$0xff]
    %v78 = vld [vmem:[#allocation5 + $0x70] sm:$0xff]
    %v79 = vld [vmem:[#allocation5 + $0x78] sm:$0xff]
    %v80 = vld [vmem:[%s2] sm:$0x1]
    %v82 = vlaneseq
    %v83 = vshrl.u32 %v82, 7
    %v84 = vsub.s32 0, %v83
    %v85 = vrot.slane %v80, %v84
    %87 = vmatprep.subr.mxu0 0.0
    %88 = vmatpush1.msra.mxu0 %v64
    %89 = vmatprep.subr.mxu0 0.0
    %90 = vmatpush1.msra.mxu0 %v65
    %91 = vmatprep.subr.mxu0 0.0
    %92 = vmatpush1.msra.mxu0 %v66
    %93 = vmatprep.subr.mxu0 0.0
    %94 = vmatpush1.msra.mxu0 %v67
    %95 = vmatprep.subr.mxu0 0.0
    %96 = vmatpush1.msra.mxu0 %v68
    %97 = vmatprep.subr.mxu0 0.0
    %98 = vmatpush1.msra.mxu0 %v69
    %99 = vmatprep.subr.mxu0 0.0
    %100 = vmatpush1.msra.mxu0 %v70
    %101 = vmatprep.subr.mxu0 0.0
    %102 = vmatpush1.msra.mxu0 %v71
    %103 = vmatprep.subr.mxu0 0.0
    %104 = vmatpush1.msra.mxu0 %v72
    %105 = vmatprep.subr.mxu0 0.0
    %106 = vmatpush1.msra.mxu0 %v73
    %107 = vmatprep.subr.mxu0 0.0
    %108 = vmatpush1.msra.mxu0 %v74
    %109 = vmatprep.subr.mxu0 0.0
    %110 = vmatpush1.msra.mxu0 %v75
    %111 = vmatprep.subr.mxu0 0.0
    %112 = vmatpush1.msra.mxu0 %v76
    %113 = vmatprep.subr.mxu0 0.0
    %114 = vmatpush1.msra.mxu0 %v77
    %115 = vmatprep.subr.mxu0 0.0
    %116 = vmatpush1.msra.mxu0 %v78
    %117 = vmatprep.subr.mxu0 0.0
    %118 = vmatpush1.msra.mxu0 %v79
    %119 = vmatprep.subr.mxu0 0.0
    %120 = vmatpush1.msra.mxu0 0.0
    %121 = vmatprep.subr.mxu0 0.0
    %122 = vmatpush1.msra.mxu0 0.0
    %123 = vmatprep.subr.mxu0 0.0
    %124 = vmatpush1.msra.mxu0 0.0
    %125 = vmatprep.subr.mxu0 0.0
    %126 = vmatpush1.msra.mxu0 0.0
    %127 = vmatprep.subr.mxu0 0.0
    %128 = vmatpush1.msra.mxu0 0.0
    %129 = vmatprep.subr.mxu0 0.0
    %130 = vmatpush1.msra.mxu0 0.0
    %131 = vmatprep.subr.mxu0 0.0
    %132 = vmatpush1.msra.mxu0 0.0
    %133 = vmatprep.subr.mxu0 0.0
    %134 = vmatpush1.msra.mxu0 0.0
    %135 = vmatprep.subr.mxu0 0.0
    %136 = vmatpush1.msra.mxu0 0.0
    %137 = vmatprep.subr.mxu0 0.0
    %138 = vmatpush1.msra.mxu0 0.0
    %139 = vmatprep.subr.mxu0 0.0
    %140 = vmatpush1.msra.mxu0 0.0
    %141 = vmatprep.subr.mxu0 0.0
    %142 = vmatpush1.msra.mxu0 0.0
    %143 = vmatprep.subr.mxu0 0.0
    %144 = vmatpush1.msra.mxu0 0.0
    %145 = vmatprep.subr.mxu0 0.0
    %146 = vmatpush1.msra.mxu0 0.0
    %147 = vmatprep.subr.mxu0 0.0
    %148 = vmatpush1.msra.mxu0 0.0
    %149 = vmatprep.subr.mxu0 0.0
    %150 = vmatpush1.msra.mxu0 0.0
    %151 = vmatprep.mubr.f32.mxu0 0.0
    %152 = vmatmul.mubr.f32.gmra.mrb[0].mxu0 %v62
    %v153 = vpop.f32.mrb[0].mxu0
    %v154 = vadd.f32 %v85, %v153
    %v155 = vpop.f32.mrb[0].mxu0
    %156 = vmatprep.mubr.f32.mxu0 0.0
    %157 = vmatmul.mubr.f32.gmra.mrb[0].mxu0 %v63
    %v158 = vpop.f32.mrb[0].mxu0
    %v159 = vadd.f32 %v85, %v158
    %v160 = vpop.f32.mrb[0].mxu0
    %161 = vdwg.mxu0
    %v162 = vmax.f32 %v154, 0.0
    %v163 = vmax.f32 %v159, 0.0
    %v164 = vld [vmem:[#allocation7] sm:$0xff]
    %v165 = vld [vmem:[#allocation7 + $0x8] sm:$0xff]
    %v166 = vld [vmem:[#allocation7 + $0x10] sm:$0xff]
    %v167 = vld [vmem:[#allocation7 + $0x18] sm:$0xff]
    %v168 = vld [vmem:[#allocation7 + $0x20] sm:$0xff]
    %v169 = vld [vmem:[#allocation7 + $0x28] sm:$0xff]
    %v170 = vld [vmem:[#allocation7 + $0x30] sm:$0xff]
    %v171 = vld [vmem:[#allocation7 + $0x38] sm:$0xff]
    %v172 = vld [vmem:[#allocation7 + $0x40] sm:$0xff]
    %v173 = vld [vmem:[#allocation7 + $0x48] sm:$0xff]
    %v174 = vld [vmem:[#allocation7 + $0x50] sm:$0xff]
    %v175 = vld [vmem:[#allocation7 + $0x58] sm:$0xff]
    %v176 = vld [vmem:[#allocation7 + $0x60] sm:$0xff]
    %v177 = vld [vmem:[#allocation7 + $0x68] sm:$0xff]
    %v178 = vld [vmem:[#allocation7 + $0x70] sm:$0xff]
    %v179 = vld [vmem:[#allocation7 + $0x78] sm:$0xff]
    %v180 = vld [vmem:[%s4] sm:$0x1]
    %v182 = vlaneseq
    %v183 = vshrl.u32 %v182, 7
    %v184 = vsub.s32 0, %v183
    %v185 = vrot.slane %v180, %v184
    %187 = vmatprep.subr.mxu0 0.0
    %188 = vmatpush1.msra.mxu0 %v164
    %189 = vmatprep.subr.mxu0 0.0
    %190 = vmatpush1.msra.mxu0 %v165
    %191 = vmatprep.subr.mxu0 0.0
    %192 = vmatpush1.msra.mxu0 %v166
    %193 = vmatprep.subr.mxu0 0.0
    %194 = vmatpush1.msra.mxu0 %v167
    %195 = vmatprep.subr.mxu0 0.0
    %196 = vmatpush1.msra.mxu0 %v168
    %197 = vmatprep.subr.mxu0 0.0
    %198 = vmatpush1.msra.mxu0 %v169
    %199 = vmatprep.subr.mxu0 0.0
    %200 = vmatpush1.msra.mxu0 %v170
    %201 = vmatprep.subr.mxu0 0.0
    %202 = vmatpush1.msra.mxu0 %v171
    %203 = vmatprep.subr.mxu0 0.0
    %204 = vmatpush1.msra.mxu0 %v172
    %205 = vmatprep.subr.mxu0 0.0
    %206 = vmatpush1.msra.mxu0 %v173
    %207 = vmatprep.subr.mxu0 0.0
    %208 = vmatpush1.msra.mxu0 %v174
    %209 = vmatprep.subr.mxu0 0.0
    %210 = vmatpush1.msra.mxu0 %v175
    %211 = vmatprep.subr.mxu0 0.0
    %212 = vmatpush1.msra.mxu0 %v176
    %213 = vmatprep.subr.mxu0 0.0
    %214 = vmatpush1.msra.mxu0 %v177
    %215 = vmatprep.subr.mxu0 0.0
    %216 = vmatpush1.msra.mxu0 %v178
    %217 = vmatprep.subr.mxu0 0.0
    %218 = vmatpush1.msra.mxu0 %v179
    %219 = vmatprep.subr.mxu0 0.0
    %220 = vmatpush1.msra.mxu0 0.0
    %221 = vmatprep.subr.mxu0 0.0
    %222 = vmatpush1.msra.mxu0 0.0
    %223 = vmatprep.subr.mxu0 0.0
    %224 = vmatpush1.msra.mxu0 0.0
    %225 = vmatprep.subr.mxu0 0.0
    %226 = vmatpush1.msra.mxu0 0.0
    %227 = vmatprep.subr.mxu0 0.0
    %228 = vmatpush1.msra.mxu0 0.0
    %229 = vmatprep.subr.mxu0 0.0
    %230 = vmatpush1.msra.mxu0 0.0
    %231 = vmatprep.subr.mxu0 0.0
    %232 = vmatpush1.msra.mxu0 0.0
    %233 = vmatprep.subr.mxu0 0.0
    %234 = vmatpush1.msra.mxu0 0.0
    %235 = vmatprep.subr.mxu0 0.0
    %236 = vmatpush1.msra.mxu0 0.0
    %237 = vmatprep.subr.mxu0 0.0
    %238 = vmatpush1.msra.mxu0 0.0
    %239 = vmatprep.subr.mxu0 0.0
    %240 = vmatpush1.msra.mxu0 0.0
    %241 = vmatprep.subr.mxu0 0.0
    %242 = vmatpush1.msra.mxu0 0.0
    %243 = vmatprep.subr.mxu0 0.0
    %244 = vmatpush1.msra.mxu0 0.0
    %245 = vmatprep.subr.mxu0 0.0
    %246 = vmatpush1.msra.mxu0 0.0
    %247 = vmatprep.subr.mxu0 0.0
    %248 = vmatpush1.msra.mxu0 0.0
    %249 = vmatprep.subr.mxu0 0.0
    %250 = vmatpush1.msra.mxu0 0.0
    %251 = vmatprep.mubr.f32.mxu0 0.0
    %252 = vmatmul.mubr.f32.gmra.mrb[0].mxu0 %v162
    %v253 = vpop.f32.mrb[0].mxu0
    %v254 = vadd.f32 %v185, %v253
    %v255 = vpop.f32.mrb[0].mxu0
    %256 = vmatprep.mubr.f32.mxu0 0.0
    %257 = vmatmul.mubr.f32.gmra.mrb[0].mxu0 %v163
    %v258 = vpop.f32.mrb[0].mxu0
    %v259 = vadd.f32 %v185, %v258
    %v260 = vpop.f32.mrb[0].mxu0
    %261 = vdwg.mxu0
    %262 = vst [vmem:[#allocation8] sm:$0xff] %v254
    %263 = vst [vmem:[#allocation8 + $0x8] sm:$0xff] %v259
    // Predicated region
    $region34: #{tpu_custom_call.1} parent=1 // pred_check
      _
    $region35: #{tpu_custom_call.1} parent=1 // pred_check_branch
      %265 = sbr.rel (0) target = $region37
    $region36: #{tpu_custom_call.1} parent=1 // pred_region
      %s267 = ssub.s32 256, 256
      %268 = vsyncadd [#allocation4], %s267
      %s269 = sshll.u32 [#allocation8], 4
      %s270 = int_to_ptr.vmem [resolvable:$true] %s269
      %275 = dma.vmem_to_hbm [thread:$0]  %s270, 256, %s5, [#allocation4], 128, 128, 8
    $region37: #{tpu_custom_call.1} parent=1 // pred_fallthru
      _
    // Predicated region
    $region38: #{tpu_custom_call.1} parent=1 // pred_check
      _
    $region39: #{tpu_custom_call.1} parent=1 // pred_check_branch
      %277 = sbr.rel (0) target = $region41
    $region40: #{tpu_custom_call.1} parent=1 // pred_region
      %278 = dma.done [#allocation4], 256
    $region41: #{tpu_custom_call.1} parent=1 // pred_fallthru
      _
    %279 = vsyncpa [#allocation3], 1
    %280 = vsyncpa [#allocation6], 1
    %281 = vsyncpa [#allocation4], 1

</llo_original>
